<compile_context>
chip_gen: v5e
topology: v5e:2x2
jax: 0.10.0
libtpu: 0.0.40
codegen_flags: <defaults>
</compile_context>

<pallas_src>
import math

import jax
import jax.numpy as jnp
from jax import lax
from jax.experimental import pallas as pl
from jax.experimental.pallas import tpu as pltpu


# Contract the K (last) dim of the (tm, tk) activation tile with the K (last)
# dim of the (tn, tk) weight tile -> (tm, tn).  This "NT" layout is handled by
# MXU dimension numbers directly.
# TODO(synk): if a bundle dump ever shows a per-step vxpose on the weight tile,
# pre-transpose the weights once in the wrapper to (K, N) instead.
_DN = (((1,), (1,)), ((), ()))


def _gelu_tanh(x):
    # TODO(synk): F.gelu's default is the exact erf GELU; erf has no guaranteed
    # Mosaic lowering, so the tanh approximation is used (|err| < ~1e-3, below
    # bf16 output precision; Gemma itself uses approximate='tanh').
    c = 0.7978845608028654  # sqrt(2/pi)
    return 0.5 * x * (1.0 + jnp.tanh(c * (x + 0.044715 * x * x * x)))


# ----------------------------- kernel factories -------------------------------


def _make_gate_up_kernel(quant: bool, multi_k: bool):
    """Fused gate/up projection + gelu(gate)*up epilogue.

    Ref order: x, w_gate, w_up, [s_gate, s_up,] out, [acc_gate, acc_up].
    """

    def kernel(*refs):
        if quant:
            x_ref, wg_ref, wu_ref, sg_ref, su_ref, o_ref = refs[:6]
            scratch = refs[6:]
        else:
            x_ref, wg_ref, wu_ref, o_ref = refs[:4]
            scratch = refs[4:]

        x = x_ref[...]
        wg = wg_ref[...].astype(x.dtype)   # int8 widened in-register only
        wu = wu_ref[...].astype(x.dtype)
        g = lax.dot_general(x, wg, dimension_numbers=_DN,
                            preferred_element_type=jnp.float32)
        u = lax.dot_general(x, wu, dimension_numbers=_DN,
                            preferred_element_type=jnp.float32)

        def finalize(gate, up):
            if quant:
                gate = gate * sg_ref[...]   # (tm, tn) * (1, tn)  lane-dense
                up = up * su_ref[...]
            o_ref[...] = (_gelu_tanh(gate) * up).astype(o_ref.dtype)

        if not multi_k:
            # Single K step: no f32 accumulators at all.
            finalize(g, u)
            return

        accg_ref, accu_ref = scratch
        k = pl.program_id(2)

        @pl.when(k == 0)
        def _():                            # write-direct, no zero-fill pass
            accg_ref[...] = g
            accu_ref[...] = u

        @pl.when(k > 0)
        def _():
            accg_ref[...] += g
            accu_ref[...] += u

        @pl.when(k == pl.num_programs(2) - 1)
        def _():
            finalize(accg_ref[...], accu_ref[...])

    return kernel


def _make_linear_kernel(quant: bool, multi_k: bool):
    """out = x @ w.T, optional int8 dequant at finalize.

    Ref order: x, w, [s,] out, [acc].
    """

    def kernel(*refs):
        if quant:
            x_ref, w_ref, s_ref, o_ref = refs[:4]
            scratch = refs[4:]
        else:
            x_ref, w_ref, o_ref = refs[:3]
            scratch = refs[3:]

        x = x_ref[...]
        w = w_ref[...].astype(x.dtype)
        y = lax.dot_general(x, w, dimension_numbers=_DN,
                            preferred_element_type=jnp.float32)

        def finalize(acc):
            if quant:
                acc = acc * s_ref[...]
            o_ref[...] = acc.astype(o_ref.dtype)

        if not multi_k:
            finalize(y)
            return

        (acc_ref,) = scratch
        k = pl.program_id(2)

        @pl.when(k == 0)
        def _():
            acc_ref[...] = y

        @pl.when(k > 0)
        def _():
            acc_ref[...] += y

        @pl.when(k == pl.num_programs(2) - 1)
        def _():
            finalize(acc_ref[...])

    return kernel


# ----------------------------- tiling / config --------------------------------


def _pick_tile(dim, target, granule=128, prefer_even_count=False):
    """Largest tile <= target, a multiple of `granule`, that divides `dim`.

    With prefer_even_count, first try tiles giving an even number of tiles
    (so the 'parallel' grid axis balances across v7x's two TensorCores).
    Falls back to the full dimension (always a legal block) if `dim` is not a
    multiple of `granule` or no divisor exists.
    """
    if dim % granule != 0:
        # TODO(synk): a huge non-granule dim would fall back to a full-axis
        # tile; real Gemma dims are multiples of 128 so this is not padded.
        return dim
    start = max(granule, min((target // granule) * granule, dim))
    if prefer_even_count:
        t = start
        while t >= granule:
            if dim % t == 0 and (dim // t) % 2 == 0:
                return t
            t -= granule
    t = start
    while t >= granule:
        if dim % t == 0:
            return t
        t -= granule
    return dim


def _hw_config():
    """Tile / VMEM targets keyed off physical VMEM (v5e/v6e: 128 MiB/TC,
    v7x: 64 MiB/TC).  Conservative default if the query is unavailable."""
    vmem = 64 * 1024 * 1024
    try:
        info = pltpu.get_tpu_info()
        vmem = int(getattr(info, "vmem_capacity_bytes", vmem))
    except Exception:
        pass
    if vmem >= 100 * 1024 * 1024:          # v5e / v6e
        return dict(vmem_limit=96 * 1024 * 1024,
                    tm=512, tn=1024, tk_gate_up=8192, tk_down=4096)
    # v7x: 64 MiB physical; leave headroom for bf16-widened int8 tiles + accs.
    return dict(vmem_limit=44 * 1024 * 1024,
                tm=256, tn=512, tk_gate_up=4096, tk_down=2048)


def _compiler_params(vmem_limit):
    return pltpu.CompilerParams(
        dimension_semantics=("parallel", "parallel", "arbitrary"),
        vmem_limit_bytes=vmem_limit)


# ----------------------------- wrappers ----------------------------------------


def _fused_gate_up(x2, w_gate, w_up, s_gate=None, s_up=None, *, cfg):
    """gelu(x @ w_gate.T) * (x @ w_up.T), optionally int8-dequantized."""
    M, K = x2.shape
    N, Kw = w_gate.shape
    assert K == Kw and w_up.shape == (N, Kw)
    quant = s_gate is not None

    tm = _pick_tile(M, cfg["tm"], granule=8)
    tn = _pick_tile(N, cfg["tn"], granule=128, prefer_even_count=True)
    tk = _pick_tile(K, cfg["tk_gate_up"], granule=128)
    grid = (M // tm, N // tn, K // tk)     # K (reduction) last
    multi_k = grid[2] > 1

    x_spec = pl.BlockSpec((tm, tk), lambda i, j, k: (i, k))
    w_spec = pl.BlockSpec((tn, tk), lambda i, j, k: (j, k))
    o_spec = pl.BlockSpec((tm, tn), lambda i, j, k: (i, j))

    in_specs = [x_spec, w_spec, w_spec]
    args = [x2, w_gate, w_up]
    if quant:
        s_spec = pl.BlockSpec((1, tn), lambda i, j, k: (0, j))
        in_specs += [s_spec, s_spec]
        args += [s_gate.reshape(1, N).astype(jnp.float32),
                 s_up.reshape(1, N).astype(jnp.float32)]
    scratch = [pltpu.VMEM((tm, tn), jnp.float32)] * 2 if multi_k else []

    return pl.pallas_call(
        _make_gate_up_kernel(quant, multi_k),
        out_shape=jax.ShapeDtypeStruct((M, N), x2.dtype),
        grid_spec=pltpu.PrefetchScalarGridSpec(
            num_scalar_prefetch=0, grid=grid,
            in_specs=in_specs, out_specs=o_spec, scratch_shapes=scratch),
        compiler_params=_compiler_params(cfg["vmem_limit"]),
    )(*args)


def _linear(x2, weight, scaler=None, *, cfg):
    """Pallas equivalent of gemma Linear.forward on a 2-D x (down projection)."""
    M, K = x2.shape
    N, Kw = weight.shape
    assert K == Kw
    quant = scaler is not None

    tm = _pick_tile(M, cfg["tm"], granule=8)
    tn = _pick_tile(N, cfg["tn"], granule=128, prefer_even_count=True)
    tk = _pick_tile(K, cfg["tk_down"], granule=128)
    grid = (M // tm, N // tn, K // tk)
    multi_k = grid[2] > 1

    x_spec = pl.BlockSpec((tm, tk), lambda i, j, k: (i, k))
    w_spec = pl.BlockSpec((tn, tk), lambda i, j, k: (j, k))
    o_spec = pl.BlockSpec((tm, tn), lambda i, j, k: (i, j))

    in_specs = [x_spec, w_spec]
    args = [x2, weight]
    if quant:
        s_spec = pl.BlockSpec((1, tn), lambda i, j, k: (0, j))
        in_specs += [s_spec]
        args += [scaler.reshape(1, N).astype(jnp.float32)]
    scratch = [pltpu.VMEM((tm, tn), jnp.float32)] if multi_k else []

    return pl.pallas_call(
        _make_linear_kernel(quant, multi_k),
        out_shape=jax.ShapeDtypeStruct((M, N), x2.dtype),
        grid_spec=pltpu.PrefetchScalarGridSpec(
            num_scalar_prefetch=0, grid=grid,
            in_specs=in_specs, out_specs=o_spec, scratch_shapes=scratch),
        compiler_params=_compiler_params(cfg["vmem_limit"]),
    )(*args)


def gemma_mlp_forward(x, gate_w, up_w, down_w,
                      gate_scaler=None, up_scaler=None, down_scaler=None):
    """Pallas GemmaMLP forward.

    x:        (..., hidden)                  (bf16 recommended)
    gate_w:   (intermediate, hidden)         float (bf16) or int8
    up_w:     (intermediate, hidden)         float (bf16) or int8
    down_w:   (hidden, intermediate)         float (bf16) or int8
    *_scaler: (out_features,) f32, required iff the matching weight is int8
    returns:  (..., hidden) in x.dtype
    """
    *lead, hidden = x.shape
    M = math.prod(lead) if lead else 1
    x2 = x.reshape(M, hidden)
    cfg = _hw_config()

    fuse = _fused_gate_up(x2, gate_w, up_w, gate_scaler, up_scaler, cfg=cfg)
    out2 = _linear(fuse, down_w, down_scaler, cfg=cfg)
    return out2.reshape(*lead, down_w.shape[0])


# ------------------------------- main -----------------------------------------

if __name__ == "__main__":
    key = jax.random.PRNGKey(0)
    keys = jax.random.split(key, 8)

    batch, seq = 2, 8
    hidden, inter = 256, 512

    x = jax.random.normal(keys[0], (batch, seq, hidden),
                          dtype=jnp.float32).astype(jnp.bfloat16)
    x32 = x.astype(jnp.float32)

    def gelu_tanh(v):
        c = 0.7978845608028654
        return 0.5 * v * (1.0 + jnp.tanh(c * (v + 0.044715 * v ** 3)))

    # ---------------- non-quantized (bf16 weights) path ----------------------
    wg = (jax.random.normal(keys[1], (inter, hidden), jnp.float32) * 0.02
          ).astype(jnp.bfloat16)
    wu = (jax.random.normal(keys[2], (inter, hidden), jnp.float32) * 0.02
          ).astype(jnp.bfloat16)
    wd = (jax.random.normal(keys[3], (hidden, inter), jnp.float32) * 0.02
          ).astype(jnp.bfloat16)

    out = gemma_mlp_forward(x, wg, wu, wd)
    out = jax.block_until_ready(out)
    assert out.shape == (batch, seq, hidden)
    assert out.dtype == x.dtype

    gate = jnp.einsum("bsk,nk->bsn", x32, wg.astype(jnp.float32))
    up = jnp.einsum("bsk,nk->bsn", x32, wu.astype(jnp.float32))
    fuse = (gelu_tanh(gate) * up).astype(jnp.bfloat16).astype(jnp.float32)
    ref = jnp.einsum("bsn,hn->bsh", fuse, wd.astype(jnp.float32))
    err = jnp.max(jnp.abs(out.astype(jnp.float32) - ref))
    assert float(err) < 1e-2, f"fp path max abs err {err}"

    # ---------------- quantized (int8 weight + per-row scaler) path ----------
    wg_q = jax.random.randint(keys[4], (inter, hidden), -127, 128, dtype=jnp.int8)
    wu_q = jax.random.randint(keys[5], (inter, hidden), -127, 128, dtype=jnp.int8)
    wd_q = jax.random.randint(keys[6], (hidden, inter), -127, 128, dtype=jnp.int8)
    sg = jax.random.uniform(keys[7], (inter,), jnp.float32, 0.001, 0.004)
    su = jax.random.uniform(keys[0], (inter,), jnp.float32, 0.001, 0.004)
    sd = jax.random.uniform(keys[1], (hidden,), jnp.float32, 0.001, 0.004)

    out_q = gemma_mlp_forward(x, wg_q, wu_q, wd_q, sg, su, sd)
    out_q = jax.block_until_ready(out_q)
    assert out_q.shape == (batch, seq, hidden)

    wg_dq = wg_q.astype(jnp.float32) * sg[:, None]
    wu_dq = wu_q.astype(jnp.float32) * su[:, None]
    wd_dq = wd_q.astype(jnp.float32) * sd[:, None]
    gate_q = jnp.einsum("bsk,nk->bsn", x32, wg_dq)
    up_q = jnp.einsum("bsk,nk->bsn", x32, wu_dq)
    fuse_q = (gelu_tanh(gate_q) * up_q).astype(jnp.bfloat16).astype(jnp.float32)
    ref_q = jnp.einsum("bsn,hn->bsh", fuse_q, wd_dq)
    rel = jnp.max(jnp.abs(out_q.astype(jnp.float32) - ref_q)
                  / (jnp.abs(ref_q) + 1e-2))
    assert float(rel) < 3e-2, f"quant path max rel err {rel}"

    print("KERNEL_OK")
</pallas_src>

<mosaic_0001>
module attributes {stable_mosaic.version = 11 : i64} {
  func.func @kernel(%arg0: i32, %arg1: i32, %arg2: i32, %arg3: memref<16x256xbf16, #tpu.memory_space<vmem>>, %arg4: memref<256x256xbf16, #tpu.memory_space<vmem>>, %arg5: memref<256x256xbf16, #tpu.memory_space<vmem>>, %arg6: memref<16x256xbf16, #tpu.memory_space<vmem>>) attributes {dimension_semantics = [#tpu.dimension_semantics<parallel>, #tpu.dimension_semantics<parallel>, #tpu.dimension_semantics<arbitrary>], iteration_bounds = array<i64: 1, 2, 1>, scalar_prefetch = 0 : i64, scratch_operands = 0 : i64, tpu.core_type = #tpu.core_type<tc>, window_params = [{transform_indices = @transform_0, window_bounds = array<i64: 16, 256>}, {transform_indices = @transform_1, window_bounds = array<i64: 256, 256>}, {transform_indices = @transform_2, window_bounds = array<i64: 256, 256>}, {transform_indices = @transform_3, window_bounds = array<i64: 16, 256>}]} {
    %c0 = arith.constant 0 : index
    %c0_0 = arith.constant 0 : index
    %0 = vector.load %arg3[%c0, %c0_0] : memref<16x256xbf16, #tpu.memory_space<vmem>>, vector<16x256xbf16>
    %c0_1 = arith.constant 0 : index
    %c0_2 = arith.constant 0 : index
    %1 = vector.load %arg4[%c0_1, %c0_2] : memref<256x256xbf16, #tpu.memory_space<vmem>>, vector<256x256xbf16>
    %c0_3 = arith.constant 0 : index
    %c0_4 = arith.constant 0 : index
    %2 = vector.load %arg5[%c0_3, %c0_4] : memref<256x256xbf16, #tpu.memory_space<vmem>>, vector<256x256xbf16>
    %cst = arith.constant dense<0.000000e+00> : vector<16x256xf32>
    %3 = tpu.matmul %0, %1, %cst {dimension_numbers = #tpu.dot_dimension_numbers<[1], [1], [0], [0], [0, 0, 1, 0], [], []>} : vector<16x256xbf16>, vector<256x256xbf16>, vector<16x256xf32> -> vector<16x256xf32>
    %cst_5 = arith.constant dense<0.000000e+00> : vector<16x256xf32>
    %4 = tpu.matmul %0, %2, %cst_5 {dimension_numbers = #tpu.dot_dimension_numbers<[1], [1], [0], [0], [0, 0, 1, 0], [], []>} : vector<16x256xbf16>, vector<256x256xbf16>, vector<16x256xf32> -> vector<16x256xf32>
    %cst_6 = arith.constant 5.000000e-01 : f32
    %5 = vector.broadcast %cst_6 : f32 to vector<16x256xf32>
    %6 = arith.mulf %5, %3 : vector<16x256xf32>
    %cst_7 = arith.constant 4.471500e-02 : f32
    %7 = vector.broadcast %cst_7 : f32 to vector<16x256xf32>
    %8 = arith.mulf %7, %3 : vector<16x256xf32>
    %9 = arith.mulf %8, %3 : vector<16x256xf32>
    %10 = arith.mulf %9, %3 : vector<16x256xf32>
    %11 = arith.addf %3, %10 : vector<16x256xf32>
    %cst_8 = arith.constant 0.797884583 : f32
    %12 = vector.broadcast %cst_8 : f32 to vector<16x256xf32>
    %13 = arith.mulf %12, %11 : vector<16x256xf32>
    %14 = math.tanh %13 : vector<16x256xf32>
    %cst_9 = arith.constant 1.000000e+00 : f32
    %15 = vector.broadcast %cst_9 : f32 to vector<16x256xf32>
    %16 = arith.addf %15, %14 : vector<16x256xf32>
    %17 = arith.mulf %6, %16 : vector<16x256xf32>
    %18 = arith.mulf %17, %4 : vector<16x256xf32>
    %19 = arith.truncf %18 : vector<16x256xf32> to vector<16x256xbf16>
    %c0_10 = arith.constant 0 : index
    %c0_11 = arith.constant 0 : index
    %20 = vector.load %arg6[%c0_10, %c0_11] : memref<16x256xbf16, #tpu.memory_space<vmem>>, vector<16x256xbf16>
    tpu.vector_store %arg6[%c0_10, %c0_11], %19 {strides = array<i32>} : memref<16x256xbf16, #tpu.memory_space<vmem>>, vector<16x256xbf16>,
    return
  }
  func.func @transform_0(%arg0: i32, %arg1: i32, %arg2: i32) -> (i32, i32) {
    %c0_i32 = arith.constant 0 : i32
    return %arg0, %arg2 : i32, i32
  }
  func.func @transform_1(%arg0: i32, %arg1: i32, %arg2: i32) -> (i32, i32) {
    %c0_i32 = arith.constant 0 : i32
    return %arg1, %arg2 : i32, i32
  }
  func.func @transform_2(%arg0: i32, %arg1: i32, %arg2: i32) -> (i32, i32) {
    %c0_i32 = arith.constant 0 : i32
    return %arg1, %arg2 : i32, i32
  }
  func.func @transform_3(%arg0: i32, %arg1: i32, %arg2: i32) -> (i32, i32) {
    %c0_i32 = arith.constant 0 : i32
    return %arg0, %arg1 : i32, i32
  }
}

</mosaic_0001>

<llo_original>
// kernel: tpu_custom_call.1
$region0: #{tpu_custom_call.1}
  #allocation0 [shape = 'u32[]', space=smem, size = 0x4, offset = 0x4, fixed_abs, tag = 'smem constant byte address 0x4 - core index']
  #allocation1 [shape = 'u32[72,128]{1,0:T(1,128)}', space=vmem, size = 0x9000, scoped, tag = 'internal scratch']
  %s0 = inlined_call_operand.hbm [shape: bf16[16,256], index: 0, kind: input, shape index: {}]
  %s1 = inlined_call_operand.hbm [shape: bf16[512,256], index: 1, kind: input, shape index: {}]
  %s2 = inlined_call_operand.hbm [shape: bf16[512,256], index: 2, kind: input, shape index: {}]
  %s3 = inlined_call_operand.hbm [shape: bf16[16,512], index: 3, kind: output, shape index: {}]
  %s4 = sld [smem:[#allocation0]]
  $region57: #{tpu_custom_call.1} parent=0
    _
  %s6 = ssub.s32 1, %s4
  %s7 = scalar_select 0, %s6, %s4
  $region1: #{tpu_custom_call.1} parent=0
    #allocation2 [shape = 'u8[8192]{0}', space=vmem, size = 0x2000, scoped, tag = 'input window, operand 0, single buffered']
    #allocation3 [shape = 's32[2]{0}', space=sflag, size = 0x8, scoped, tag = 'scoped memory for tpu_custom_call.1']
    #allocation4 [shape = 's32[2]{0}', space=sflag, size = 0x8, scoped, tag = 'scoped memory for tpu_custom_call.1']
    #allocation5 [shape = 'u8[262144]{0}', space=vmem, size = 0x40000, scoped, tag = 'input window, operand 1']
    #allocation6 [shape = 's32[2]{0}', space=sflag, size = 0x8, scoped, tag = 'scoped memory for tpu_custom_call.1']
    #allocation7 [shape = 'u8[262144]{0}', space=vmem, size = 0x40000, scoped, tag = 'input window, operand 2']
    #allocation8 [shape = 'u8[16384]{0}', space=vmem, size = 0x4000, scoped, tag = 'output window, operand 0']
    %8 = vsyncpa [#allocation3], 0
    %9 = vsyncpa [#allocation6], 0
    %s10 = scalar_lea.sflag [#allocation6], 1
    %11 = vsyncpa %s10, 0
    %12 = vsyncpa [#allocation4], 0
    %s13 = scalar_lea.sflag [#allocation4], 1
    %14 = vsyncpa %s13, 0
    loop: start=0, step=1, limit=4
    $region2: #{tpu_custom_call.1} parent=1 // loop_pre_header
      _
    $region3: #{tpu_custom_call.1} parent=1 // loop_header
      %s16 = sphi 0, %s20
      %p17 = scmp.ge.s32.totalorder %s16, 4
      %s23 = sphi 0, %s42
      %s24 = sphi 0, %s38
      %s25 = sphi 0, %s34
      %s26 = sphi 0, %s23
      %s27 = sphi 0, %s24
      %s28 = sphi 0, %s25
      %s29 = sphi 0, %s26
      %s30 = sphi 0, %s27
      %s31 = sphi 0, %s28
      %s47 = sphi 0, %s49
      %s50 = sphi 0, %s47
      %s51 = sphi 0, %s50
      %s67 = sphi 0, %s51
      %s75 = sphi 0, %s77
      %s78 = sphi 0, %s75
      %s79 = sphi 0, %s78
      %s95 = sphi 0, %s79
      %s103 = sphi 0, %s105
      %s106 = sphi 0, %s103
      %s107 = sphi 0, %s106
      %s123 = sphi 0, %s107
      %s131 = sphi 0, %s133
      %s134 = sphi 0, %s131
      %s135 = sphi 0, %s134
      %s151 = sphi 0, %s135
    $region4: #{tpu_custom_call.1} parent=1 // loop_header_branch
      %19 = sbr.rel (%p17) target = $region8
    $region5: #{tpu_custom_call.1} parent=1 // loop_body
      %s21 = ssub.s32 %s16, 1
      %s22 = ssub.s32 %s16, 2
      %s32 = sadd.s32 1, %s25
      %p33 = scmp.ge.s32.totalorder %s32, 1
      %s34 = scalar_select %p33, 0, %s32
      %s35 = sadd.s32 1, %s24
      %s36 = scalar_select %p33, %s35, %s24
      %p37 = scmp.ge.s32.totalorder %s36, 2
      %s38 = scalar_select %p37, 0, %s36
      %s39 = sadd.s32 1, %s23
      %s40 = scalar_select %p37, %s39, %s23
      %p41 = scmp.ge.s32.totalorder %s40, 1
      %s42 = scalar_select %p41, 0, %s40
      %s43 = ssub.s32 %s23, %s42
      %s44 = ssub.s32 %s25, %s34
      %s45 = sor.u32 %s43, %s44
      %p46 = scmp.eq.s32.totalorder %s45, 0
      %s48 = sadd.s32 %s47, 1
      %s49 = scalar_select %p46, %s47, %s48
      %p52 = pneg %p46
      %p53 = scmp.eq.s32.totalorder %s16, 1
      %p54 = por %p52, %p53
      %p55 = scmp.ne.s32.totalorder %s47, %s50
      %p56 = scmp.eq.s32.totalorder %s16, 0
      %p57 = por %p55, %p56
      %p58 = scmp.ne.s32.totalorder %s47, %s50
      %p59 = scmp.eq.s32.totalorder %s21, 1
      %p60 = por %p58, %p59
      %p61 = scmp.ne.s32.totalorder %s50, %s51
      %p62 = scmp.eq.s32.totalorder %s21, 0
      %p63 = por %p61, %p62
      %p64 = scmp.ne.s32.totalorder %s50, %s51
      %p65 = scmp.eq.s32.totalorder %s22, 1
      %p66 = por %p64, %p65
      %p68 = scmp.ne.s32.totalorder %s51, %s67
      %p69 = scmp.eq.s32.totalorder %s22, 0
      %p70 = por %p68, %p69
      %s71 = ssub.s32 %s24, %s38
      %s72 = ssub.s32 %s25, %s34
      %s73 = sor.u32 %s71, %s72
      %p74 = scmp.eq.s32.totalorder %s73, 0
      %s76 = sadd.s32 %s75, 1
      %s77 = scalar_select %p74, %s75, %s76
      %p80 = pneg %p74
      %p81 = scmp.eq.s32.totalorder %s16, 1
      %p82 = por %p80, %p81
      %p83 = scmp.ne.s32.totalorder %s75, %s78
      %p84 = scmp.eq.s32.totalorder %s16, 0
      %p85 = por %p83, %p84
      %p86 = scmp.ne.s32.totalorder %s75, %s78
      %p87 = scmp.eq.s32.totalorder %s21, 1
      %p88 = por %p86, %p87
      %p89 = scmp.ne.s32.totalorder %s78, %s79
      %p90 = scmp.eq.s32.totalorder %s21, 0
      %p91 = por %p89, %p90
      %p92 = scmp.ne.s32.totalorder %s78, %s79
      %p93 = scmp.eq.s32.totalorder %s22, 1
      %p94 = por %p92, %p93
      %p96 = scmp.ne.s32.totalorder %s79, %s95
      %p97 = scmp.eq.s32.totalorder %s22, 0
      %p98 = por %p96, %p97
      %s99 = ssub.s32 %s24, %s38
      %s100 = ssub.s32 %s25, %s34
      %s101 = sor.u32 %s99, %s100
      %p102 = scmp.eq.s32.totalorder %s101, 0
      %s104 = sadd.s32 %s103, 1
      %s105 = scalar_select %p102, %s103, %s104
      %p108 = pneg %p102
      %p109 = scmp.eq.s32.totalorder %s16, 1
      %p110 = por %p108, %p109
      %p111 = scmp.ne.s32.totalorder %s103, %s106
      %p112 = scmp.eq.s32.totalorder %s16, 0
      %p113 = por %p111, %p112
      %p114 = scmp.ne.s32.totalorder %s103, %s106
      %p115 = scmp.eq.s32.totalorder %s21, 1
      %p116 = por %p114, %p115
      %p117 = scmp.ne.s32.totalorder %s106, %s107
      %p118 = scmp.eq.s32.totalorder %s21, 0
      %p119 = por %p117, %p118
      %p120 = scmp.ne.s32.totalorder %s106, %s107
      %p121 = scmp.eq.s32.totalorder %s22, 1
      %p122 = por %p120, %p121
      %p124 = scmp.ne.s32.totalorder %s107, %s123
      %p125 = scmp.eq.s32.totalorder %s22, 0
      %p126 = por %p124, %p125
      %s127 = ssub.s32 %s23, %s42
      %s128 = ssub.s32 %s24, %s38
      %s129 = sor.u32 %s127, %s128
      %p130 = scmp.eq.s32.totalorder %s129, 0
      %s132 = sadd.s32 %s131, 1
      %s133 = scalar_select %p130, %s131, %s132
      %p136 = pneg %p130
      %p137 = scmp.eq.s32.totalorder %s16, 1
      %p138 = por %p136, %p137
      %p139 = scmp.ne.s32.totalorder %s131, %s134
      %p140 = scmp.eq.s32.totalorder %s16, 0
      %p141 = por %p139, %p140
      %p142 = scmp.ne.s32.totalorder %s131, %s134
      %p143 = scmp.eq.s32.totalorder %s21, 1
      %p144 = por %p142, %p143
      %p145 = scmp.ne.s32.totalorder %s134, %s135
      %p146 = scmp.eq.s32.totalorder %s21, 0
      %p147 = por %p145, %p146
      %p148 = scmp.ne.s32.totalorder %s134, %s135
      %p149 = scmp.eq.s32.totalorder %s22, 1
      %p150 = por %p148, %p149
      %p152 = scmp.ne.s32.totalorder %s135, %s151
      %p153 = scmp.eq.s32.totalorder %s22, 0
      %p154 = por %p152, %p153
      %p155 = scmp.le.s32.totalorder 1, %s16
      %p156 = scmp.lt.s32.totalorder %s16, 3
      %p157 = pnand %p155, %p156
      %p158 = pneg %p157
      // Predicated region
      $region9: #{tpu_custom_call.1} parent=5 // pred_check
        _
      $region10: #{tpu_custom_call.1} parent=5 // pred_check_branch
        %160 = sbr.rel (%p157) target = $region12
      $region11: #{tpu_custom_call.1} parent=5 // pred_region
        %s161 = ssub.s32 %s16, 1
        // Predicated region
        $region13: #{tpu_custom_call.1} parent=11 // pred_check
          %p162 = pneg %p63
        $region14: #{tpu_custom_call.1} parent=11 // pred_check_branch
          %164 = sbr.rel (%p162) target = $region16
        $region15: #{tpu_custom_call.1} parent=11 // pred_region
          %s165 = smul.u32 2, %s26
          %s166 = smul.u32 2, %s28
          %168 = vsyncadd [#allocation3], 0
          %s169 = smul.addr %s165, 2
          %s170 = sadd.s32 %s166, %s169
          %s171 = smul.addr %s170, 4
          %s172 = scalar_lea.hbm %s0, %s171
          %s173 = sshll.u32 %s172, 4
          %s174 = int_to_ptr.hbm [resolvable:$true] %s173
          %s175 = sshll.u32 [#allocation2], 4
          %s176 = int_to_ptr.vmem [resolvable:$true] %s175
          %181 = dma.hbm_to_vmem [thread:$0]  %s174, 256, %s176, [#allocation3], 128, 128, 8
        $region16: #{tpu_custom_call.1} parent=11 // pred_fallthru
          _
      $region12: #{tpu_custom_call.1} parent=5 // pred_fallthru
        _
      %p182 = scmp.lt.s32.totalorder %s16, 2
      // Predicated region
      $region17: #{tpu_custom_call.1} parent=5 // pred_check
        %p183 = pneg %p182
      $region18: #{tpu_custom_call.1} parent=5 // pred_check_branch
        %185 = sbr.rel (%p183) target = $region20
      $region19: #{tpu_custom_call.1} parent=5 // pred_region
        // Predicated region
        $region21: #{tpu_custom_call.1} parent=19 // pred_check
          %p186 = pneg %p85
        $region22: #{tpu_custom_call.1} parent=19 // pred_check_branch
          %188 = sbr.rel (%p186) target = $region24
        $region23: #{tpu_custom_call.1} parent=19 // pred_region
          %s189 = sand.u32 %s16, 1
          %s190 = scalar_lea.sflag [#allocation6], %s189
          %s191 = sand.u32 %s75, 1
          %s192 = smul.addr %s191, 256
          %s193 = scalar_lea.vmem [#allocation5], %s192
          %s194 = smul.u32 32, %s24
          %s195 = smul.u32 2, %s25
          %197 = vsyncadd %s190, 0
          %s198 = smul.addr %s194, 2
          %s199 = sadd.s32 %s195, %s198
          %s200 = smul.addr %s199, 4
          %s201 = scalar_lea.hbm %s1, %s200
          %s202 = sshll.u32 %s201, 4
          %s203 = int_to_ptr.hbm [resolvable:$true] %s202
          %s204 = sshll.u32 %s193, 4
          %s205 = int_to_ptr.vmem [resolvable:$true] %s204
          %210 = dma.hbm_to_vmem [thread:$0]  %s203, 4096, %s205, %s190, 128, 128, 8
        $region24: #{tpu_custom_call.1} parent=19 // pred_fallthru
          _
        // Predicated region
        $region25: #{tpu_custom_call.1} parent=19 // pred_check
          %p211 = pneg %p113
        $region26: #{tpu_custom_call.1} parent=19 // pred_check_branch
          %213 = sbr.rel (%p211) target = $region28
        $region27: #{tpu_custom_call.1} parent=19 // pred_region
          %s214 = sand.u32 %s16, 1
          %s215 = scalar_lea.sflag [#allocation6], %s214
          %s216 = sand.u32 %s103, 1
          %s217 = smul.addr %s216, 256
          %s218 = scalar_lea.vmem [#allocation7], %s217
          %s219 = smul.u32 32, %s24
          %s220 = smul.u32 2, %s25
          %222 = vsyncadd %s215, 0
          %s223 = smul.addr %s219, 2
          %s224 = sadd.s32 %s220, %s223
          %s225 = smul.addr %s224, 4
          %s226 = scalar_lea.hbm %s2, %s225
          %s227 = sshll.u32 %s226, 4
          %s228 = int_to_ptr.hbm [resolvable:$true] %s227
          %s229 = sshll.u32 %s218, 4
          %s230 = int_to_ptr.vmem [resolvable:$true] %s229
          %235 = dma.hbm_to_vmem [thread:$0]  %s228, 4096, %s230, %s215, 128, 128, 8
        $region28: #{tpu_custom_call.1} parent=19 // pred_fallthru
          _
      $region20: #{tpu_custom_call.1} parent=5 // pred_fallthru
        _
      %p236 = scmp.le.s32.totalorder 1, %s16
      %p237 = scmp.lt.s32.totalorder %s16, 3
      %p238 = pnand %p236, %p237
      %p239 = pneg %p238
      // Predicated region
      $region29: #{tpu_custom_call.1} parent=5 // pred_check
        _
      $region30: #{tpu_custom_call.1} parent=5 // pred_check_branch
        %241 = sbr.rel (%p238) target = $region32
      $region31: #{tpu_custom_call.1} parent=5 // pred_region
        %s242 = ssub.s32 %s16, 1
        // Predicated region
        $region33: #{tpu_custom_call.1} parent=31 // pred_check
          %p243 = pneg %p63
        $region34: #{tpu_custom_call.1} parent=31 // pred_check_branch
          %245 = sbr.rel (%p243) target = $region36
        $region35: #{tpu_custom_call.1} parent=31 // pred_region
          %247 = dma.done [#allocation3], 256
        $region36: #{tpu_custom_call.1} parent=31 // pred_fallthru
          _
        %s248 = sand.u32 %s21, 1
        %s249 = scalar_lea.sflag [#allocation6], %s248
        %s250 = sand.u32 %s78, 1
        %s251 = smul.addr %s250, 256
        %s252 = scalar_lea.vmem [#allocation5], %s251
        // Predicated region
        $region37: #{tpu_custom_call.1} parent=31 // pred_check
          %p253 = pneg %p91
        $region38: #{tpu_custom_call.1} parent=31 // pred_check_branch
          %255 = sbr.rel (%p253) target = $region40
        $region39: #{tpu_custom_call.1} parent=31 // pred_region
          %257 = dma.done %s249, 4096
        $region40: #{tpu_custom_call.1} parent=31 // pred_fallthru
          _
        %s258 = sand.u32 %s21, 1
        %s259 = scalar_lea.sflag [#allocation6], %s258
        %s260 = sand.u32 %s106, 1
        %s261 = smul.addr %s260, 256
        %s262 = scalar_lea.vmem [#allocation7], %s261
        // Predicated region
        $region41: #{tpu_custom_call.1} parent=31 // pred_check
          %p263 = pneg %p119
        $region42: #{tpu_custom_call.1} parent=31 // pred_check_branch
          %265 = sbr.rel (%p263) target = $region44
        $region43: #{tpu_custom_call.1} parent=31 // pred_region
          %267 = dma.done %s259, 4096
        $region44: #{tpu_custom_call.1} parent=31 // pred_fallthru
          _
        %p268 = pneg %p63
        %p269 = pneg %p60
        %s270 = sand.u32 %s21, 1
        %s271 = scalar_lea.sflag [#allocation6], %s270
        %s272 = sand.u32 %s78, 1
        %s273 = smul.addr %s272, 256
        %s274 = scalar_lea.vmem [#allocation5], %s273
        %p275 = pneg %p91
        %p276 = pneg %p88
        %s277 = sand.u32 %s21, 1
        %s278 = scalar_lea.sflag [#allocation6], %s277
        %s279 = sand.u32 %s106, 1
        %s280 = smul.addr %s279, 256
        %s281 = scalar_lea.vmem [#allocation7], %s280
        %p282 = pneg %p119
        %p283 = pneg %p116
        %p284 = pneg %p147
        %p285 = pneg %p144
        %s286 = sand.u32 %s134, 1
        %s287 = scalar_lea.sflag [#allocation4], %s286
        %s288 = sand.u32 %s134, 1
        %s289 = smul.addr %s288, 16
        %s290 = scalar_lea.vmem [#allocation8], %s289
        %s291 = smul.u32 2, %s26
        %s292 = smul.u32 2, %s28
        %s293 = smul.u32 32, %s27
        %s294 = smul.u32 2, %s28
        %s295 = smul.u32 32, %s27
        %s296 = smul.u32 2, %s28
        %s297 = smul.u32 2, %s26
        %s298 = smul.u32 2, %s27
        %v299 = vld [vmem:[#allocation2] sm:$0xff]
        %v300 = vld [vmem:[#allocation2 + $0x8] sm:$0xff]
        %v301 = vld [vmem:[%s252] sm:$0xff]
        %v302 = vld [vmem:[%s252 + $0x8] sm:$0xff]
        %v303 = vld [vmem:[%s252 + $0x10] sm:$0xff]
        %v304 = vld [vmem:[%s252 + $0x18] sm:$0xff]
        %v305 = vld [vmem:[%s252 + $0x20] sm:$0xff]
        %v306 = vld [vmem:[%s252 + $0x28] sm:$0xff]
        %v307 = vld [vmem:[%s252 + $0x30] sm:$0xff]
        %v308 = vld [vmem:[%s252 + $0x38] sm:$0xff]
        %v309 = vld [vmem:[%s252 + $0x40] sm:$0xff]
        %v310 = vld [vmem:[%s252 + $0x48] sm:$0xff]
        %v311 = vld [vmem:[%s252 + $0x50] sm:$0xff]
        %v312 = vld [vmem:[%s252 + $0x58] sm:$0xff]
        %v313 = vld [vmem:[%s252 + $0x60] sm:$0xff]
        %v314 = vld [vmem:[%s252 + $0x68] sm:$0xff]
        %v315 = vld [vmem:[%s252 + $0x70] sm:$0xff]
        %v316 = vld [vmem:[%s252 + $0x78] sm:$0xff]
        %v317 = vld [vmem:[%s252 + $0x80] sm:$0xff]
        %v318 = vld [vmem:[%s252 + $0x88] sm:$0xff]
        %v319 = vld [vmem:[%s252 + $0x90] sm:$0xff]
        %v320 = vld [vmem:[%s252 + $0x98] sm:$0xff]
        %v321 = vld [vmem:[%s252 + $0xa0] sm:$0xff]
        %v322 = vld [vmem:[%s252 + $0xa8] sm:$0xff]
        %v323 = vld [vmem:[%s252 + $0xb0] sm:$0xff]
        %v324 = vld [vmem:[%s252 + $0xb8] sm:$0xff]
        %v325 = vld [vmem:[%s252 + $0xc0] sm:$0xff]
        %v326 = vld [vmem:[%s252 + $0xc8] sm:$0xff]
        %v327 = vld [vmem:[%s252 + $0xd0] sm:$0xff]
        %v328 = vld [vmem:[%s252 + $0xd8] sm:$0xff]
        %v329 = vld [vmem:[%s252 + $0xe0] sm:$0xff]
        %v330 = vld [vmem:[%s252 + $0xe8] sm:$0xff]
        %v331 = vld [vmem:[%s252 + $0xf0] sm:$0xff]
        %v332 = vld [vmem:[%s252 + $0xf8] sm:$0xff]
        %v333 = vld [vmem:[%s262] sm:$0xff]
        %v334 = vld [vmem:[%s262 + $0x8] sm:$0xff]
        %v335 = vld [vmem:[%s262 + $0x10] sm:$0xff]
        %v336 = vld [vmem:[%s262 + $0x18] sm:$0xff]
        %v337 = vld [vmem:[%s262 + $0x20] sm:$0xff]
        %v338 = vld [vmem:[%s262 + $0x28] sm:$0xff]
        %v339 = vld [vmem:[%s262 + $0x30] sm:$0xff]
        %v340 = vld [vmem:[%s262 + $0x38] sm:$0xff]
        %v341 = vld [vmem:[%s262 + $0x40] sm:$0xff]
        %v342 = vld [vmem:[%s262 + $0x48] sm:$0xff]
        %v343 = vld [vmem:[%s262 + $0x50] sm:$0xff]
        %v344 = vld [vmem:[%s262 + $0x58] sm:$0xff]
        %v345 = vld [vmem:[%s262 + $0x60] sm:$0xff]
        %v346 = vld [vmem:[%s262 + $0x68] sm:$0xff]
        %v347 = vld [vmem:[%s262 + $0x70] sm:$0xff]
        %v348 = vld [vmem:[%s262 + $0x78] sm:$0xff]
        %v349 = vld [vmem:[%s262 + $0x80] sm:$0xff]
        %v350 = vld [vmem:[%s262 + $0x88] sm:$0xff]
        %v351 = vld [vmem:[%s262 + $0x90] sm:$0xff]
        %v352 = vld [vmem:[%s262 + $0x98] sm:$0xff]
        %v353 = vld [vmem:[%s262 + $0xa0] sm:$0xff]
        %v354 = vld [vmem:[%s262 + $0xa8] sm:$0xff]
        %v355 = vld [vmem:[%s262 + $0xb0] sm:$0xff]
        %v356 = vld [vmem:[%s262 + $0xb8] sm:$0xff]
        %v357 = vld [vmem:[%s262 + $0xc0] sm:$0xff]
        %v358 = vld [vmem:[%s262 + $0xc8] sm:$0xff]
        %v359 = vld [vmem:[%s262 + $0xd0] sm:$0xff]
        %v360 = vld [vmem:[%s262 + $0xd8] sm:$0xff]
        %v361 = vld [vmem:[%s262 + $0xe0] sm:$0xff]
        %v362 = vld [vmem:[%s262 + $0xe8] sm:$0xff]
        %v363 = vld [vmem:[%s262 + $0xf0] sm:$0xff]
        %v364 = vld [vmem:[%s262 + $0xf8] sm:$0xff]
        %v367 = vunpack.c.l.b16 %v299
        %v368 = vunpack.c.h.b16 %v299
        %v369 = vunpack.c.l.b16 %v300
        %v370 = vunpack.c.h.b16 %v300
        %v371 = vpack.c.b16 %v369, %v367
        %v372 = vpack.c.b16 %v370, %v368
        %v407 = vunpack.c.l.b16 %v301
        %v408 = vunpack.c.h.b16 %v301
        %v409 = vunpack.c.l.b16 %v302
        %v410 = vunpack.c.h.b16 %v302
        %v411 = vunpack.c.l.b16 %v303
        %v412 = vunpack.c.h.b16 %v303
        %v413 = vunpack.c.l.b16 %v304
        %v414 = vunpack.c.h.b16 %v304
        %v415 = vunpack.c.l.b16 %v305
        %v416 = vunpack.c.h.b16 %v305
        %v417 = vunpack.c.l.b16 %v306
        %v418 = vunpack.c.h.b16 %v306
        %v419 = vunpack.c.l.b16 %v307
        %v420 = vunpack.c.h.b16 %v307
        %v421 = vunpack.c.l.b16 %v308
        %v422 = vunpack.c.h.b16 %v308
        %v423 = vunpack.c.l.b16 %v309
        %v424 = vunpack.c.h.b16 %v309
        %v425 = vunpack.c.l.b16 %v310
        %v426 = vunpack.c.h.b16 %v310
        %v427 = vunpack.c.l.b16 %v311
        %v428 = vunpack.c.h.b16 %v311
        %v429 = vunpack.c.l.b16 %v312
        %v430 = vunpack.c.h.b16 %v312
        %v431 = vunpack.c.l.b16 %v313
        %v432 = vunpack.c.h.b16 %v313
        %v433 = vunpack.c.l.b16 %v314
        %v434 = vunpack.c.h.b16 %v314
        %v435 = vunpack.c.l.b16 %v315
        %v436 = vunpack.c.h.b16 %v315
        %v437 = vunpack.c.l.b16 %v316
        %v438 = vunpack.c.h.b16 %v316
        %v439 = vunpack.c.l.b16 %v317
        %v440 = vunpack.c.h.b16 %v317
        %v441 = vunpack.c.l.b16 %v318
        %v442 = vunpack.c.h.b16 %v318
        %v443 = vunpack.c.l.b16 %v319
        %v444 = vunpack.c.h.b16 %v319
        %v445 = vunpack.c.l.b16 %v320
        %v446 = vunpack.c.h.b16 %v320
        %v447 = vunpack.c.l.b16 %v321
        %v448 = vunpack.c.h.b16 %v321
        %v449 = vunpack.c.l.b16 %v322
        %v450 = vunpack.c.h.b16 %v322
        %v451 = vunpack.c.l.b16 %v323
        %v452 = vunpack.c.h.b16 %v323
        %v453 = vunpack.c.l.b16 %v324
        %v454 = vunpack.c.h.b16 %v324
        %v455 = vunpack.c.l.b16 %v325
        %v456 = vunpack.c.h.b16 %v325
        %v457 = vunpack.c.l.b16 %v326
        %v458 = vunpack.c.h.b16 %v326
        %v459 = vunpack.c.l.b16 %v327
        %v460 = vunpack.c.h.b16 %v327
        %v461 = vunpack.c.l.b16 %v328
        %v462 = vunpack.c.h.b16 %v328
        %v463 = vunpack.c.l.b16 %v329
        %v464 = vunpack.c.h.b16 %v329
        %v465 = vunpack.c.l.b16 %v330
        %v466 = vunpack.c.h.b16 %v330
        %v467 = vunpack.c.l.b16 %v331
        %v468 = vunpack.c.h.b16 %v331
        %v469 = vunpack.c.l.b16 %v332
        %v470 = vunpack.c.h.b16 %v332
        %v471 = vpack.c.b16 %v409, %v407
        %v472 = vpack.c.b16 %v410, %v408
        %v473 = vpack.c.b16 %v413, %v411
        %v474 = vpack.c.b16 %v414, %v412
        %v475 = vpack.c.b16 %v417, %v415
        %v476 = vpack.c.b16 %v418, %v416
        %v477 = vpack.c.b16 %v421, %v419
        %v478 = vpack.c.b16 %v422, %v420
        %v479 = vpack.c.b16 %v425, %v423
        %v480 = vpack.c.b16 %v426, %v424
        %v481 = vpack.c.b16 %v429, %v427
        %v482 = vpack.c.b16 %v430, %v428
        %v483 = vpack.c.b16 %v433, %v431
        %v484 = vpack.c.b16 %v434, %v432
        %v485 = vpack.c.b16 %v437, %v435
        %v486 = vpack.c.b16 %v438, %v436
        %v487 = vpack.c.b16 %v441, %v439
        %v488 = vpack.c.b16 %v442, %v440
        %v489 = vpack.c.b16 %v445, %v443
        %v490 = vpack.c.b16 %v446, %v444
        %v491 = vpack.c.b16 %v449, %v447
        %v492 = vpack.c.b16 %v450, %v448
        %v493 = vpack.c.b16 %v453, %v451
        %v494 = vpack.c.b16 %v454, %v452
        %v495 = vpack.c.b16 %v457, %v455
        %v496 = vpack.c.b16 %v458, %v456
        %v497 = vpack.c.b16 %v461, %v459
        %v498 = vpack.c.b16 %v462, %v460
        %v499 = vpack.c.b16 %v465, %v463
        %v500 = vpack.c.b16 %v466, %v464
        %v501 = vpack.c.b16 %v469, %v467
        %v502 = vpack.c.b16 %v470, %v468
        %535 = vmatpush.bf16.xpose.msra.mxu0 %v485
        %536 = vmatpush.bf16.xpose.msra.mxu0 %v483
        %537 = vmatpush.bf16.xpose.msra.mxu0 %v481
        %538 = vmatpush.bf16.xpose.msra.mxu0 %v479
        %539 = vmatpush.bf16.xpose.msra.mxu0 %v477
        %540 = vmatpush.bf16.xpose.msra.mxu0 %v475
        %541 = vmatpush.bf16.xpose.msra.mxu0 %v473
        %542 = vmatpush.bf16.xpose.msra.mxu0 %v471
        %543 = vmatmul.bf16.gmra.mxu0 %v371
        %v544 = vpop.f32.mrf.mxu0
        %v545 = vadd.f32 0.0, %v544
        %v546 = vpop.f32.mrf.mxu0
        %v547 = vadd.f32 0.0, %v546
        %548 = vdwg.mxu0
        %549 = vmatpush.bf16.xpose.msra.mxu0 %v486
        %550 = vmatpush.bf16.xpose.msra.mxu0 %v484
        %551 = vmatpush.bf16.xpose.msra.mxu0 %v482
        %552 = vmatpush.bf16.xpose.msra.mxu0 %v480
        %553 = vmatpush.bf16.xpose.msra.mxu0 %v478
        %554 = vmatpush.bf16.xpose.msra.mxu0 %v476
        %555 = vmatpush.bf16.xpose.msra.mxu0 %v474
        %556 = vmatpush.bf16.xpose.msra.mxu0 %v472
        %557 = vmatmul.bf16.gmra.mxu0 %v372
        %v558 = vpop.f32.mrf.mxu0
        %v559 = vadd.f32 %v545, %v558
        %v560 = vpop.f32.mrf.mxu0
        %v561 = vadd.f32 %v547, %v560
        %562 = vdwg.mxu0
        %563 = vmatpush.bf16.xpose.msra.mxu0 %v501
        %564 = vmatpush.bf16.xpose.msra.mxu0 %v499
        %565 = vmatpush.bf16.xpose.msra.mxu0 %v497
        %566 = vmatpush.bf16.xpose.msra.mxu0 %v495
        %567 = vmatpush.bf16.xpose.msra.mxu0 %v493
        %568 = vmatpush.bf16.xpose.msra.mxu0 %v491
        %569 = vmatpush.bf16.xpose.msra.mxu0 %v489
        %570 = vmatpush.bf16.xpose.msra.mxu0 %v487
        %571 = vmatmul.bf16.gmra.mxu0 %v371
        %v572 = vpop.f32.mrf.mxu0
        %v573 = vadd.f32 0.0, %v572
        %v574 = vpop.f32.mrf.mxu0
        %v575 = vadd.f32 0.0, %v574
        %576 = vdwg.mxu0
        %577 = vmatpush.bf16.xpose.msra.mxu0 %v502
        %578 = vmatpush.bf16.xpose.msra.mxu0 %v500
        %579 = vmatpush.bf16.xpose.msra.mxu0 %v498
        %580 = vmatpush.bf16.xpose.msra.mxu0 %v496
        %581 = vmatpush.bf16.xpose.msra.mxu0 %v494
        %582 = vmatpush.bf16.xpose.msra.mxu0 %v492
        %583 = vmatpush.bf16.xpose.msra.mxu0 %v490
        %584 = vmatpush.bf16.xpose.msra.mxu0 %v488
        %585 = vmatmul.bf16.gmra.mxu0 %v372
        %v586 = vpop.f32.mrf.mxu0
        %v587 = vadd.f32 %v573, %v586
        %v588 = vpop.f32.mrf.mxu0
        %v589 = vadd.f32 %v575, %v588
        %590 = vdwg.mxu0
        %v623 = vunpack.c.l.b16 %v333
        %v624 = vunpack.c.h.b16 %v333
        %v625 = vunpack.c.l.b16 %v334
        %v626 = vunpack.c.h.b16 %v334
        %v627 = vunpack.c.l.b16 %v335
        %v628 = vunpack.c.h.b16 %v335
        %v629 = vunpack.c.l.b16 %v336
        %v630 = vunpack.c.h.b16 %v336
        %v631 = vunpack.c.l.b16 %v337
        %v632 = vunpack.c.h.b16 %v337
        %v633 = vunpack.c.l.b16 %v338
        %v634 = vunpack.c.h.b16 %v338
        %v635 = vunpack.c.l.b16 %v339
        %v636 = vunpack.c.h.b16 %v339
        %v637 = vunpack.c.l.b16 %v340
        %v638 = vunpack.c.h.b16 %v340
        %v639 = vunpack.c.l.b16 %v341
        %v640 = vunpack.c.h.b16 %v341
        %v641 = vunpack.c.l.b16 %v342
        %v642 = vunpack.c.h.b16 %v342
        %v643 = vunpack.c.l.b16 %v343
        %v644 = vunpack.c.h.b16 %v343
        %v645 = vunpack.c.l.b16 %v344
        %v646 = vunpack.c.h.b16 %v344
        %v647 = vunpack.c.l.b16 %v345
        %v648 = vunpack.c.h.b16 %v345
        %v649 = vunpack.c.l.b16 %v346
        %v650 = vunpack.c.h.b16 %v346
        %v651 = vunpack.c.l.b16 %v347
        %v652 = vunpack.c.h.b16 %v347
        %v653 = vunpack.c.l.b16 %v348
        %v654 = vunpack.c.h.b16 %v348
        %v655 = vunpack.c.l.b16 %v349
        %v656 = vunpack.c.h.b16 %v349
        %v657 = vunpack.c.l.b16 %v350
        %v658 = vunpack.c.h.b16 %v350
        %v659 = vunpack.c.l.b16 %v351
        %v660 = vunpack.c.h.b16 %v351
        %v661 = vunpack.c.l.b16 %v352
        %v662 = vunpack.c.h.b16 %v352
        %v663 = vunpack.c.l.b16 %v353
        %v664 = vunpack.c.h.b16 %v353
        %v665 = vunpack.c.l.b16 %v354
        %v666 = vunpack.c.h.b16 %v354
        %v667 = vunpack.c.l.b16 %v355
        %v668 = vunpack.c.h.b16 %v355
        %v669 = vunpack.c.l.b16 %v356
        %v670 = vunpack.c.h.b16 %v356
        %v671 = vunpack.c.l.b16 %v357
        %v672 = vunpack.c.h.b16 %v357
        %v673 = vunpack.c.l.b16 %v358
        %v674 = vunpack.c.h.b16 %v358
        %v675 = vunpack.c.l.b16 %v359
        %v676 = vunpack.c.h.b16 %v359
        %v677 = vunpack.c.l.b16 %v360
        %v678 = vunpack.c.h.b16 %v360
        %v679 = vunpack.c.l.b16 %v361
        %v680 = vunpack.c.h.b16 %v361
        %v681 = vunpack.c.l.b16 %v362
        %v682 = vunpack.c.h.b16 %v362
        %v683 = vunpack.c.l.b16 %v363
        %v684 = vunpack.c.h.b16 %v363
        %v685 = vunpack.c.l.b16 %v364
        %v686 = vunpack.c.h.b16 %v364
        %v687 = vpack.c.b16 %v625, %v623
        %v688 = vpack.c.b16 %v626, %v624
        %v689 = vpack.c.b16 %v629, %v627
        %v690 = vpack.c.b16 %v630, %v628
        %v691 = vpack.c.b16 %v633, %v631
        %v692 = vpack.c.b16 %v634, %v632
        %v693 = vpack.c.b16 %v637, %v635
        %v694 = vpack.c.b16 %v638, %v636
        %v695 = vpack.c.b16 %v641, %v639
        %v696 = vpack.c.b16 %v642, %v640
        %v697 = vpack.c.b16 %v645, %v643
        %v698 = vpack.c.b16 %v646, %v644
        %v699 = vpack.c.b16 %v649, %v647
        %v700 = vpack.c.b16 %v650, %v648
        %v701 = vpack.c.b16 %v653, %v651
        %v702 = vpack.c.b16 %v654, %v652
        %v703 = vpack.c.b16 %v657, %v655
        %v704 = vpack.c.b16 %v658, %v656
        %v705 = vpack.c.b16 %v661, %v659
        %v706 = vpack.c.b16 %v662, %v660
        %v707 = vpack.c.b16 %v665, %v663
        %v708 = vpack.c.b16 %v666, %v664
        %v709 = vpack.c.b16 %v669, %v667
        %v710 = vpack.c.b16 %v670, %v668
        %v711 = vpack.c.b16 %v673, %v671
        %v712 = vpack.c.b16 %v674, %v672
        %v713 = vpack.c.b16 %v677, %v675
        %v714 = vpack.c.b16 %v678, %v676
        %v715 = vpack.c.b16 %v681, %v679
        %v716 = vpack.c.b16 %v682, %v680
        %v717 = vpack.c.b16 %v685, %v683
        %v718 = vpack.c.b16 %v686, %v684
        %751 = vmatpush.bf16.xpose.msra.mxu0 %v701
        %752 = vmatpush.bf16.xpose.msra.mxu0 %v699
        %753 = vmatpush.bf16.xpose.msra.mxu0 %v697
        %754 = vmatpush.bf16.xpose.msra.mxu0 %v695
        %755 = vmatpush.bf16.xpose.msra.mxu0 %v693
        %756 = vmatpush.bf16.xpose.msra.mxu0 %v691
        %757 = vmatpush.bf16.xpose.msra.mxu0 %v689
        %758 = vmatpush.bf16.xpose.msra.mxu0 %v687
        %759 = vmatmul.bf16.gmra.mxu0 %v371
        %v760 = vpop.f32.mrf.mxu0
        %v761 = vadd.f32 0.0, %v760
        %v762 = vpop.f32.mrf.mxu0
        %v763 = vadd.f32 0.0, %v762
        %764 = vdwg.mxu0
        %765 = vmatpush.bf16.xpose.msra.mxu0 %v702
        %766 = vmatpush.bf16.xpose.msra.mxu0 %v700
        %767 = vmatpush.bf16.xpose.msra.mxu0 %v698
        %768 = vmatpush.bf16.xpose.msra.mxu0 %v696
        %769 = vmatpush.bf16.xpose.msra.mxu0 %v694
        %770 = vmatpush.bf16.xpose.msra.mxu0 %v692
        %771 = vmatpush.bf16.xpose.msra.mxu0 %v690
        %772 = vmatpush.bf16.xpose.msra.mxu0 %v688
        %773 = vmatmul.bf16.gmra.mxu0 %v372
        %v774 = vpop.f32.mrf.mxu0
        %v775 = vadd.f32 %v761, %v774
        %v776 = vpop.f32.mrf.mxu0
        %v777 = vadd.f32 %v763, %v776
        %778 = vdwg.mxu0
        %779 = vmatpush.bf16.xpose.msra.mxu0 %v717
        %780 = vmatpush.bf16.xpose.msra.mxu0 %v715
        %781 = vmatpush.bf16.xpose.msra.mxu0 %v713
        %782 = vmatpush.bf16.xpose.msra.mxu0 %v711
        %783 = vmatpush.bf16.xpose.msra.mxu0 %v709
        %784 = vmatpush.bf16.xpose.msra.mxu0 %v707
        %785 = vmatpush.bf16.xpose.msra.mxu0 %v705
        %786 = vmatpush.bf16.xpose.msra.mxu0 %v703
        %787 = vmatmul.bf16.gmra.mxu0 %v371
        %v788 = vpop.f32.mrf.mxu0
        %v789 = vadd.f32 0.0, %v788
        %v790 = vpop.f32.mrf.mxu0
        %v791 = vadd.f32 0.0, %v790
        %792 = vdwg.mxu0
        %793 = vmatpush.bf16.xpose.msra.mxu0 %v718
        %794 = vmatpush.bf16.xpose.msra.mxu0 %v716
        %795 = vmatpush.bf16.xpose.msra.mxu0 %v714
        %796 = vmatpush.bf16.xpose.msra.mxu0 %v712
        %797 = vmatpush.bf16.xpose.msra.mxu0 %v710
        %798 = vmatpush.bf16.xpose.msra.mxu0 %v708
        %799 = vmatpush.bf16.xpose.msra.mxu0 %v706
        %800 = vmatpush.bf16.xpose.msra.mxu0 %v704
        %801 = vmatmul.bf16.gmra.mxu0 %v372
        %v802 = vpop.f32.mrf.mxu0
        %v803 = vadd.f32 %v789, %v802
        %v804 = vpop.f32.mrf.mxu0
        %v805 = vadd.f32 %v791, %v804
        %806 = vdwg.mxu0
        %v807 = vmul.f32 %v559, 0.5
        %v808 = vmul.f32 %v587, 0.5
        %v809 = vmul.f32 %v561, 0.5
        %v810 = vmul.f32 %v589, 0.5
        %v811 = vmul.f32 %v559, 0.044715
        %v812 = vmul.f32 %v587, 0.044715
        %v813 = vmul.f32 %v561, 0.044715
        %v814 = vmul.f32 %v589, 0.044715
        %v815 = vmul.f32 %v811, %v559
        %v816 = vmul.f32 %v812, %v587
        %v817 = vmul.f32 %v813, %v561
        %v818 = vmul.f32 %v814, %v589
        %v819 = vmul.f32 %v815, %v559
        %v820 = vmul.f32 %v816, %v587
        %v821 = vmul.f32 %v817, %v561
        %v822 = vmul.f32 %v818, %v589
        %v823 = vadd.f32 %v559, %v819
        %v824 = vadd.f32 %v587, %v820
        %v825 = vadd.f32 %v561, %v821
        %v826 = vadd.f32 %v589, %v822
        %v827 = vmul.f32 %v823, 0.7978846
        %v828 = vmul.f32 %v824, 0.7978846
        %v829 = vmul.f32 %v825, 0.7978846
        %v830 = vmul.f32 %v826, 0.7978846
        %v831 = vtanh.pop %v827
        %v832 = vtanh.pop %v828
        %v833 = vtanh.pop %v829
        %v834 = vtanh.pop %v830
        %v835 = vadd.f32 %v831, 1.0
        %v836 = vadd.f32 %v832, 1.0
        %v837 = vadd.f32 %v833, 1.0
        %v838 = vadd.f32 %v834, 1.0
        %v839 = vmul.f32 %v807, %v835
        %v840 = vmul.f32 %v808, %v836
        %v841 = vmul.f32 %v809, %v837
        %v842 = vmul.f32 %v810, %v838
        %v843 = vmul.f32 %v839, %v775
        %v844 = vmul.f32 %v840, %v803
        %v845 = vmul.f32 %v841, %v777
        %v846 = vmul.f32 %v842, %v805
        %v847 = vpack.c.bf16 %v844, %v843
        %v848 = vpack.c.bf16 %v846, %v845
        %849 = vst [vmem:[%s290] sm:$0xff] %v847
        %850 = vst [vmem:[%s290 + $0x8] sm:$0xff] %v848
        %s851 = sand.u32 %s134, 1
        %s852 = scalar_lea.sflag [#allocation4], %s851
        %s853 = sand.u32 %s134, 1
        %s854 = smul.addr %s853, 16
        %s855 = scalar_lea.vmem [#allocation8], %s854
        // Predicated region
        $region45: #{tpu_custom_call.1} parent=31 // pred_check
          %p856 = pneg %p144
        $region46: #{tpu_custom_call.1} parent=31 // pred_check_branch
          %858 = sbr.rel (%p856) target = $region48
        $region47: #{tpu_custom_call.1} parent=31 // pred_region
          %s859 = smul.u32 2, %s26
          %s860 = smul.u32 2, %s27
          %862 = vsyncadd %s852, 0
          %s863 = smul.addr %s859, 4
          %s864 = sadd.s32 %s860, %s863
          %s865 = smul.addr %s864, 4
          %s866 = scalar_lea.hbm %s3, %s865
          %s867 = sshll.u32 %s855, 4
          %s868 = int_to_ptr.vmem [resolvable:$true] %s867
          %s869 = sshll.u32 %s866, 4
          %s870 = int_to_ptr.hbm [resolvable:$true] %s869
          %875 = dma.vmem_to_hbm [thread:$0]  %s868, 256, %s870, %s852, 128, 256, 8
        $region48: #{tpu_custom_call.1} parent=31 // pred_fallthru
          _
      $region32: #{tpu_custom_call.1} parent=5 // pred_fallthru
        _
      %p876 = scmp.le.s32.totalorder 2, %s16
      // Predicated region
      $region49: #{tpu_custom_call.1} parent=5 // pred_check
        %p877 = pneg %p876
      $region50: #{tpu_custom_call.1} parent=5 // pred_check_branch
        %879 = sbr.rel (%p877) target = $region52
      $region51: #{tpu_custom_call.1} parent=5 // pred_region
        %s880 = ssub.s32 %s16, 2
        // Predicated region
        $region53: #{tpu_custom_call.1} parent=51 // pred_check
          %p881 = pneg %p150
        $region54: #{tpu_custom_call.1} parent=51 // pred_check_branch
          %883 = sbr.rel (%p881) target = $region56
        $region55: #{tpu_custom_call.1} parent=51 // pred_region
          %s884 = sand.u32 %s135, 1
          %s885 = scalar_lea.sflag [#allocation4], %s884
          %s886 = sand.u32 %s135, 1
          %s887 = smul.addr %s886, 16
          %s888 = scalar_lea.vmem [#allocation8], %s887
          %890 = dma.done %s885, 256
        $region56: #{tpu_custom_call.1} parent=51 // pred_fallthru
          _
      $region52: #{tpu_custom_call.1} parent=5 // pred_fallthru
        _
    $region6: #{tpu_custom_call.1} parent=1 // loop_footer
      %s20 = sadd.s32 1, %s16
    $region7: #{tpu_custom_call.1} parent=1 // loop_footer_branch
      %15 = sbr.rel target = $region3
    $region8: #{tpu_custom_call.1} parent=1 // loop_exit
      _
    %891 = vsyncpa [#allocation3], 1
    %s892 = scalar_lea.sflag [#allocation3], 1
    %893 = vsyncpa %s892, 1
    %894 = vsyncpa [#allocation6], 1
    %s895 = scalar_lea.sflag [#allocation6], 1
    %896 = vsyncpa %s895, 1
    %897 = vsyncpa [#allocation4], 1
    %s898 = scalar_lea.sflag [#allocation4], 1
    %899 = vsyncpa %s898, 1

</llo_original>
